<compile_context>
chip_gen: v7x
topology: tpu7x:2x2x1
jax: 0.10.0
libtpu: 0.0.40
codegen_flags: <defaults>
</compile_context>

<pallas_src>
import math
from functools import partial

import jax
import jax.numpy as jnp
from jax.experimental import pallas as pl
from jax.experimental.pallas import tpu as pltpu

EMBED_DIM = 256  # hard-coded in Actor.__init__ (self.embedding_dim = 256)


def _round_up(x, m):
    return (x + m - 1) // m * m


def _layer_norm(x, gamma, beta, eps=1e-5):
    mu = jnp.mean(x, axis=-1, keepdims=True)
    var = jnp.mean((x - mu) ** 2, axis=-1, keepdims=True)
    return (x - mu) * jax.lax.rsqrt(var + eps) * gamma + beta


# --------------------------------------------------------------------------
# Kernel
# --------------------------------------------------------------------------
def actor_kernel(state_ref, wpack_ref, vpack_ref, out_ref, *, cfg):
    f32 = jnp.float32
    S, A = cfg["state_dim"], cfg["action_dim"]
    H, H2, H4 = cfg["H"], cfg["H2"], cfg["H4"]
    PADW, OUT_W = cfg["PADW"], cfg["OUT_W"]
    off, vs = cfg["w_off"], cfg["v_slot"]

    def W(name, rows, cols):                     # static sub-slice of the weight pack
        o = off[name]
        return wpack_ref[o:o + rows, 0:cols]

    def V(name, n):                              # 128-aligned slot of the vector pack
        o = vs[name] * PADW
        return vpack_ref[0:1, o:o + n]

    x = state_ref[...]                           # (TB, S)

    # ---------------- high_level_policy ----------------
    # dt_context == 0 (empty history) => only the first S rows of the first
    # Linear's weight contribute; the 256 embedding rows are never touched.
    # TODO(synk): Decision-Transformer branch (dt_embed / MultiheadAttention /
    # dt_norm over history deques) runs only with non-empty history; add the
    # `dt_context @ w1[S:]` term when that branch is implemented.
    h = jnp.dot(x, W("w1s", S, H), preferred_element_type=f32) + V("b1", H)
    h = _layer_norm(h, V("g1", H), V("be1", H))
    h = jnp.maximum(h, 0.0)                      # ReLU; Dropout(0.1) = identity (eval)
    h = jnp.dot(h, W("w2", H, H2), preferred_element_type=f32) + V("b2", H2)
    h = _layer_norm(h, V("g2", H2), V("be2", H2))
    h = jnp.maximum(h, 0.0)
    h = jnp.dot(h, W("w3", H2, H4), preferred_element_type=f32) + V("b3", H4)
    h = jnp.maximum(h, 0.0)
    # w4 / b4 are zero-padded to OUT_W lanes -> hla lanes >= A are exactly 0.
    hla = jnp.dot(h, W("w4", H4, OUT_W), preferred_element_type=f32) + V("b4", OUT_W)

    # ---------------- precision_refiner ----------------
    # refiner input = concat([state, high_level_action]); implemented as a
    # split matmul (state @ rw1s + hla @ rw1a_padded) — no in-kernel concat.
    r = (jnp.dot(x, W("rw1s", S, H2), preferred_element_type=f32)
         + jnp.dot(hla, W("rw1a", OUT_W, H2), preferred_element_type=f32)
         + V("rb1", H2))
    r = _layer_norm(r, V("rg1", H2), V("rbe1", H2))
    r = jnp.maximum(r, 0.0)                      # Dropout(0.1) = identity (eval)
    r = jnp.dot(r, W("rw2", H2, H4), preferred_element_type=f32) + V("rb2", H4)
    r = _layer_norm(r, V("rg2", H4), V("rbe2", H4))
    r = jnp.maximum(r, 0.0)
    refine = jnp.dot(r, W("rw3", H4, OUT_W), preferred_element_type=f32) + V("rb3", OUT_W)

    # ---------------- head ----------------
    mean = jnp.clip(hla + 0.1 * refine, -10.0, 10.0)
    out_ref[...] = mean                          # lane-dense (TB, OUT_W) store


# --------------------------------------------------------------------------
# Parameter init (matches Actor._initialize_weights) and host-side packing
# --------------------------------------------------------------------------
def init_actor_params(key, state_dim, action_dim, hidden_dim=64):
    """xavier_uniform for hidden linears, uniform(-0.003,0.003) for final
    linears, zero biases, LayerNorm gamma=1 / beta=0, log_std = -1.
    Weights are stored as (in_features, out_features) = PyTorch weight.T."""
    h, h2, h4 = hidden_dim, hidden_dim // 2, hidden_dim // 4
    keys = jax.random.split(key, 8)

    def xavier(k, fan_in, fan_out):
        lim = math.sqrt(6.0 / (fan_in + fan_out))
        return jax.random.uniform(k, (fan_in, fan_out), jnp.float32, -lim, lim)

    def final(k, fan_in, fan_out):
        return jax.random.uniform(k, (fan_in, fan_out), jnp.float32, -0.003, 0.003)

    zeros = lambda n: jnp.zeros((1, n), jnp.float32)
    ones = lambda n: jnp.ones((1, n), jnp.float32)

    return dict(
        # high_level_policy
        w1=xavier(keys[0], state_dim + EMBED_DIM, h), b1=zeros(h), g1=ones(h), be1=zeros(h),
        w2=xavier(keys[1], h, h2), b2=zeros(h2), g2=ones(h2), be2=zeros(h2),
        w3=xavier(keys[2], h2, h4), b3=zeros(h4),
        w4=final(keys[3], h4, action_dim), b4=zeros(action_dim),
        # precision_refiner
        rw1=xavier(keys[4], state_dim + action_dim, h2),
        rb1=zeros(h2), rg1=ones(h2), rbe1=zeros(h2),
        rw2=xavier(keys[5], h2, h4), rb2=zeros(h4), rg2=ones(h4), rbe2=zeros(h4),
        rw3=final(keys[6], h2 // 2, action_dim) if False else final(keys[6], h4, action_dim),
        rb3=zeros(action_dim),
        log_std=jnp.full((1, action_dim), -1.0, jnp.float32),
    )


def pack_actor_params(params, state_dim, action_dim, hidden_dim=64):
    """Pack all weights/vectors into two DMA-friendly arrays + precompute std."""
    H, H2, H4 = hidden_dim, hidden_dim // 2, hidden_dim // 4
    OUT_W = _round_up(max(action_dim, 1), 128)          # padded action width
    PADW = _round_up(max(H, OUT_W), 128)                # lane width of both packs

    w1s = params["w1"][:state_dim]                      # dt columns unused (zero context)
    rw1s = params["rw1"][:state_dim]
    rw1a = params["rw1"][state_dim:]

    # pad action-dim outputs to OUT_W so every matmul / store is lane-dense
    w4p = jnp.zeros((H4, OUT_W), jnp.float32).at[:, :action_dim].set(params["w4"])
    rw3p = jnp.zeros((H4, OUT_W), jnp.float32).at[:, :action_dim].set(params["rw3"])
    rw1a_p = jnp.zeros((OUT_W, H2), jnp.float32).at[:action_dim, :].set(rw1a)

    blocks, w_off, row = [], {}, 0

    def add(name, w):
        nonlocal row
        r8 = _round_up(w.shape[0], 8)
        blk = jnp.zeros((r8, PADW), jnp.float32).at[:w.shape[0], :w.shape[1]].set(w)
        blocks.append(blk)
        w_off[name] = row
        row += r8

    add("w1s", w1s); add("w2", params["w2"]); add("w3", params["w3"]); add("w4", w4p)
    add("rw1s", rw1s); add("rw1a", rw1a_p); add("rw2", params["rw2"]); add("rw3", rw3p)
    wpack = jnp.concatenate(blocks, axis=0)             # (rows, PADW)

    vec_names = ["b1", "g1", "be1", "b2", "g2", "be2", "b3", "b4",
                 "rb1", "rg1", "rbe1", "rb2", "rg2", "rbe2", "rb3"]
    v_slot, vrows = {}, []
    for k, name in enumerate(vec_names):
        v = params[name].reshape(-1)
        vrows.append(jnp.zeros((1, PADW), jnp.float32).at[0, :v.shape[0]].set(v))
        v_slot[name] = k
    vpack = jnp.concatenate(vrows, axis=1)              # (1, 15*PADW)

    # std depends only on params -> compute once here, not per kernel call.
    log_std = jnp.clip(params["log_std"].reshape(1, -1), -10.0, 2.0)
    std = jnp.clip(jnp.exp(log_std), 1e-4, 10.0)        # always finite -> bad_std guard is dead code

    cfg = dict(state_dim=state_dim, action_dim=action_dim, H=H, H2=H2, H4=H4,
               PADW=PADW, OUT_W=OUT_W, w_off=w_off, v_slot=v_slot)
    return dict(wpack=wpack, vpack=vpack, std=std, cfg=cfg)


# --------------------------------------------------------------------------
# Forward wrapper
# --------------------------------------------------------------------------
def actor_forward(packed, state, deterministic=False, rng=None):
    cfg = packed["cfg"]
    S, A, OUT_W = cfg["state_dim"], cfg["action_dim"], cfg["OUT_W"]

    state_2d = state[None, :] if state.ndim == 1 else state
    state_2d = state_2d.astype(jnp.float32)
    batch = state_2d.shape[0]

    # pad batch to a sublane multiple; tile large batches over a parallel grid
    # axis (sharded across TensorCores on v7x).
    TB = 128 if batch > 128 else _round_up(batch, 8)
    padded_b = _round_up(batch, TB)
    if padded_b != batch:
        state_2d = jnp.pad(state_2d, ((0, padded_b - batch), (0, 0)))
    grid = (padded_b // TB,)

    out = pl.pallas_call(
        partial(actor_kernel, cfg=cfg),
        out_shape=jax.ShapeDtypeStruct((padded_b, OUT_W), jnp.float32),
        grid_spec=pltpu.PrefetchScalarGridSpec(
            num_scalar_prefetch=0,
            grid=grid,
            in_specs=[
                pl.BlockSpec((TB, S), lambda i: (i, 0)),
                pl.BlockSpec(tuple(packed["wpack"].shape), lambda i: (0, 0)),
                pl.BlockSpec(tuple(packed["vpack"].shape), lambda i: (0, 0)),
            ],
            out_specs=pl.BlockSpec((TB, OUT_W), lambda i: (i, 0)),
        ),
        compiler_params=pltpu.CompilerParams(dimension_semantics=("parallel",)),
    )(state_2d, packed["wpack"], packed["vpack"])

    mean = out[:batch, :A]
    bad_mean = jnp.any(jnp.isnan(mean) | jnp.isinf(mean))   # torch .any() semantics
    mean = jnp.where(bad_mean, jnp.zeros_like(mean), mean)
    std = jnp.broadcast_to(packed["std"], mean.shape)

    if deterministic:
        action = jnp.clip(mean, -1.0, 1.0)
    else:
        eps = jax.random.normal(rng, mean.shape, jnp.float32)  # Normal(mean,std).rsample()
        action = jnp.clip(mean + std * eps, -1.0, 1.0)

    if batch == 1:
        action = action[0]
    return action


# --------------------------------------------------------------------------
# Pure-JAX reference (for correctness check)
# --------------------------------------------------------------------------
def actor_reference_mean(params, state_2d):
    dt = jnp.zeros((state_2d.shape[0], EMBED_DIM), jnp.float32)
    x = jnp.concatenate([state_2d, dt], axis=-1)
    h = x @ params["w1"] + params["b1"]
    h = _layer_norm(h, params["g1"], params["be1"]); h = jnp.maximum(h, 0.0)
    h = h @ params["w2"] + params["b2"]
    h = _layer_norm(h, params["g2"], params["be2"]); h = jnp.maximum(h, 0.0)
    h = h @ params["w3"] + params["b3"]; h = jnp.maximum(h, 0.0)
    hla = h @ params["w4"] + params["b4"]
    rin = jnp.concatenate([state_2d, hla], axis=-1)
    r = rin @ params["rw1"] + params["rb1"]
    r = _layer_norm(r, params["rg1"], params["rbe1"]); r = jnp.maximum(r, 0.0)
    r = r @ params["rw2"] + params["rb2"]
    r = _layer_norm(r, params["rg2"], params["rbe2"]); r = jnp.maximum(r, 0.0)
    refine = r @ params["rw3"] + params["rb3"]
    return jnp.clip(hla + 0.1 * refine, -10.0, 10.0)


if __name__ == "__main__":
    STATE_DIM, ACTION_DIM, HIDDEN_DIM, BATCH = 12, 4, 64, 2

    root = jax.random.PRNGKey(0)
    k_params, k_state, k_sample = jax.random.split(root, 3)

    params = init_actor_params(k_params, STATE_DIM, ACTION_DIM, HIDDEN_DIM)
    packed = pack_actor_params(params, STATE_DIM, ACTION_DIM, HIDDEN_DIM)
    state = jax.random.normal(k_state, (BATCH, STATE_DIM), jnp.float32)

    # deterministic path: clamp(mean, -1, 1)
    act_det = jax.block_until_ready(actor_forward(packed, state, deterministic=True))
    # stochastic path: clamp(Normal(mean, std).rsample(), -1, 1)
    act_sto = jax.block_until_ready(
        actor_forward(packed, state, deterministic=False, rng=k_sample))

    # correctness vs pure-JAX reference of the same forward pass
    ref_det = jnp.clip(actor_reference_mean(params, state), -1.0, 1.0)
    assert act_det.shape == (BATCH, ACTION_DIM)
    assert act_sto.shape == (BATCH, ACTION_DIM)
    assert bool(jnp.all(jnp.isfinite(act_det)))
    assert bool(jnp.all(jnp.isfinite(act_sto)))
    assert bool(jnp.all(jnp.abs(act_det) <= 1.0))
    assert bool(jnp.all(jnp.abs(act_sto) <= 1.0))
    assert bool(jnp.allclose(act_det, ref_det, atol=2e-5, rtol=1e-5))

    print("KERNEL_OK")
</pallas_src>

<mosaic_0001>
module attributes {stable_mosaic.version = 11 : i64} {
  func.func @actor_kernel(%arg0: i32, %arg1: memref<8x12xf32, #tpu.memory_space<vmem>>, %arg2: memref<320x128xf32, #tpu.memory_space<vmem>>, %arg3: memref<1x1920xf32, #tpu.memory_space<vmem>>, %arg4: memref<8x128xf32, #tpu.memory_space<vmem>>) attributes {dimension_semantics = [#tpu.dimension_semantics<parallel>], iteration_bounds = array<i64: 1>, scalar_prefetch = 0 : i64, scratch_operands = 0 : i64, tpu.core_type = #tpu.core_type<tc>, window_params = [{transform_indices = @transform_0, window_bounds = array<i64: 8, 12>}, {pipeline_mode = #tpu.pipeline_mode<synchronous>, transform_indices = @transform_1, window_bounds = array<i64: 320, 128>}, {pipeline_mode = #tpu.pipeline_mode<synchronous>, transform_indices = @transform_2, window_bounds = array<i64: 1, 1920>}, {transform_indices = @transform_3, window_bounds = array<i64: 8, 128>}]} {
    %c0 = arith.constant 0 : index
    %c0_0 = arith.constant 0 : index
    %0 = vector.load %arg1[%c0, %c0_0] : memref<8x12xf32, #tpu.memory_space<vmem>>, vector<8x12xf32>
    %c0_1 = arith.constant 0 : index
    %c0_2 = arith.constant 0 : index
    %1 = vector.load %arg2[%c0_1, %c0_2] : memref<320x128xf32, #tpu.memory_space<vmem>>, vector<12x64xf32>
    %cst = arith.constant dense<0.000000e+00> : vector<8x64xf32>
    %2 = tpu.matmul %0, %1, %cst {dimension_numbers = #tpu.dot_dimension_numbers<[1], [0], [0], [1], [0, 0, 1, 1], [], []>} : vector<8x12xf32>, vector<12x64xf32>, vector<8x64xf32> -> vector<8x64xf32>
    %c0_3 = arith.constant 0 : index
    %c0_4 = arith.constant 0 : index
    %3 = vector.load %arg3[%c0_3, %c0_4] : memref<1x1920xf32, #tpu.memory_space<vmem>>, vector<1x64xf32>
    %4 = vector.broadcast %3 : vector<1x64xf32> to vector<8x64xf32>
    %5 = arith.addf %2, %4 : vector<8x64xf32>
    %c0_5 = arith.constant 0 : index
    %c128 = arith.constant 128 : index
    %6 = vector.load %arg3[%c0_5, %c128] : memref<1x1920xf32, #tpu.memory_space<vmem>>, vector<1x64xf32>
    %c0_6 = arith.constant 0 : index
    %c256 = arith.constant 256 : index
    %7 = vector.load %arg3[%c0_6, %c256] : memref<1x1920xf32, #tpu.memory_space<vmem>>, vector<1x64xf32>
    %cst_7 = arith.constant dense<0.000000e+00> : vector<8xf32>
    %8 = vector.multi_reduction <add>, %5, %cst_7 [1] : vector<8x64xf32> to vector<8xf32>
    %9 = vector.shape_cast %8 : vector<8xf32> to vector<8x1xf32>
    %cst_8 = arith.constant 6.400000e+01 : f32
    %10 = vector.broadcast %cst_8 : f32 to vector<8x1xf32>
    %11 = arith.divf %9, %10 : vector<8x1xf32>
    %12 = vector.broadcast %11 : vector<8x1xf32> to vector<8x64xf32>
    %13 = arith.subf %5, %12 : vector<8x64xf32>
    %14 = arith.mulf %13, %13 : vector<8x64xf32>
    %cst_9 = arith.constant dense<0.000000e+00> : vector<8xf32>
    %15 = vector.multi_reduction <add>, %14, %cst_9 [1] : vector<8x64xf32> to vector<8xf32>
    %16 = vector.shape_cast %15 : vector<8xf32> to vector<8x1xf32>
    %cst_10 = arith.constant 6.400000e+01 : f32
    %17 = vector.broadcast %cst_10 : f32 to vector<8x1xf32>
    %18 = arith.divf %16, %17 : vector<8x1xf32>
    %19 = vector.broadcast %11 : vector<8x1xf32> to vector<8x64xf32>
    %20 = arith.subf %5, %19 : vector<8x64xf32>
    %cst_11 = arith.constant 9.99999974E-6 : f32
    %21 = vector.broadcast %cst_11 : f32 to vector<8x1xf32>
    %22 = arith.addf %18, %21 : vector<8x1xf32>
    %23 = math.rsqrt %22 : vector<8x1xf32>
    %24 = vector.broadcast %23 : vector<8x1xf32> to vector<8x64xf32>
    %25 = arith.mulf %20, %24 : vector<8x64xf32>
    %26 = vector.broadcast %6 : vector<1x64xf32> to vector<8x64xf32>
    %27 = arith.mulf %25, %26 : vector<8x64xf32>
    %28 = vector.broadcast %7 : vector<1x64xf32> to vector<8x64xf32>
    %29 = arith.addf %27, %28 : vector<8x64xf32>
    %cst_12 = arith.constant 0.000000e+00 : f32
    %30 = vector.broadcast %cst_12 : f32 to vector<8x64xf32>
    %31 = arith.maximumf %29, %30 : vector<8x64xf32>
    %c16 = arith.constant 16 : index
    %c0_13 = arith.constant 0 : index
    %32 = vector.load %arg2[%c16, %c0_13] : memref<320x128xf32, #tpu.memory_space<vmem>>, vector<64x32xf32>
    %cst_14 = arith.constant dense<0.000000e+00> : vector<8x32xf32>
    %33 = tpu.matmul %31, %32, %cst_14 {dimension_numbers = #tpu.dot_dimension_numbers<[1], [0], [0], [1], [0, 0, 1, 1], [], []>} : vector<8x64xf32>, vector<64x32xf32>, vector<8x32xf32> -> vector<8x32xf32>
    %c0_15 = arith.constant 0 : index
    %c384 = arith.constant 384 : index
    %34 = vector.load %arg3[%c0_15, %c384] : memref<1x1920xf32, #tpu.memory_space<vmem>>, vector<1x32xf32>
    %35 = vector.broadcast %34 : vector<1x32xf32> to vector<8x32xf32>
    %36 = arith.addf %33, %35 : vector<8x32xf32>
    %c0_16 = arith.constant 0 : index
    %c512 = arith.constant 512 : index
    %37 = vector.load %arg3[%c0_16, %c512] : memref<1x1920xf32, #tpu.memory_space<vmem>>, vector<1x32xf32>
    %c0_17 = arith.constant 0 : index
    %c640 = arith.constant 640 : index
    %38 = vector.load %arg3[%c0_17, %c640] : memref<1x1920xf32, #tpu.memory_space<vmem>>, vector<1x32xf32>
    %cst_18 = arith.constant dense<0.000000e+00> : vector<8xf32>
    %39 = vector.multi_reduction <add>, %36, %cst_18 [1] : vector<8x32xf32> to vector<8xf32>
    %40 = vector.shape_cast %39 : vector<8xf32> to vector<8x1xf32>
    %cst_19 = arith.constant 3.200000e+01 : f32
    %41 = vector.broadcast %cst_19 : f32 to vector<8x1xf32>
    %42 = arith.divf %40, %41 : vector<8x1xf32>
    %43 = vector.broadcast %42 : vector<8x1xf32> to vector<8x32xf32>
    %44 = arith.subf %36, %43 : vector<8x32xf32>
    %45 = arith.mulf %44, %44 : vector<8x32xf32>
    %cst_20 = arith.constant dense<0.000000e+00> : vector<8xf32>
    %46 = vector.multi_reduction <add>, %45, %cst_20 [1] : vector<8x32xf32> to vector<8xf32>
    %47 = vector.shape_cast %46 : vector<8xf32> to vector<8x1xf32>
    %cst_21 = arith.constant 3.200000e+01 : f32
    %48 = vector.broadcast %cst_21 : f32 to vector<8x1xf32>
    %49 = arith.divf %47, %48 : vector<8x1xf32>
    %50 = vector.broadcast %42 : vector<8x1xf32> to vector<8x32xf32>
    %51 = arith.subf %36, %50 : vector<8x32xf32>
    %cst_22 = arith.constant 9.99999974E-6 : f32
    %52 = vector.broadcast %cst_22 : f32 to vector<8x1xf32>
    %53 = arith.addf %49, %52 : vector<8x1xf32>
    %54 = math.rsqrt %53 : vector<8x1xf32>
    %55 = vector.broadcast %54 : vector<8x1xf32> to vector<8x32xf32>
    %56 = arith.mulf %51, %55 : vector<8x32xf32>
    %57 = vector.broadcast %37 : vector<1x32xf32> to vector<8x32xf32>
    %58 = arith.mulf %56, %57 : vector<8x32xf32>
    %59 = vector.broadcast %38 : vector<1x32xf32> to vector<8x32xf32>
    %60 = arith.addf %58, %59 : vector<8x32xf32>
    %cst_23 = arith.constant 0.000000e+00 : f32
    %61 = vector.broadcast %cst_23 : f32 to vector<8x32xf32>
    %62 = arith.maximumf %60, %61 : vector<8x32xf32>
    %c80 = arith.constant 80 : index
    %c0_24 = arith.constant 0 : index
    %63 = vector.load %arg2[%c80, %c0_24] : memref<320x128xf32, #tpu.memory_space<vmem>>, vector<32x16xf32>
    %cst_25 = arith.constant dense<0.000000e+00> : vector<8x16xf32>
    %64 = tpu.matmul %62, %63, %cst_25 {dimension_numbers = #tpu.dot_dimension_numbers<[1], [0], [0], [1], [0, 0, 1, 1], [], []>} : vector<8x32xf32>, vector<32x16xf32>, vector<8x16xf32> -> vector<8x16xf32>
    %c0_26 = arith.constant 0 : index
    %c768 = arith.constant 768 : index
    %65 = vector.load %arg3[%c0_26, %c768] : memref<1x1920xf32, #tpu.memory_space<vmem>>, vector<1x16xf32>
    %66 = vector.broadcast %65 : vector<1x16xf32> to vector<8x16xf32>
    %67 = arith.addf %64, %66 : vector<8x16xf32>
    %cst_27 = arith.constant 0.000000e+00 : f32
    %68 = vector.broadcast %cst_27 : f32 to vector<8x16xf32>
    %69 = arith.maximumf %67, %68 : vector<8x16xf32>
    %c112 = arith.constant 112 : index
    %c0_28 = arith.constant 0 : index
    %70 = vector.load %arg2[%c112, %c0_28] : memref<320x128xf32, #tpu.memory_space<vmem>>, vector<16x128xf32>
    %cst_29 = arith.constant dense<0.000000e+00> : vector<8x128xf32>
    %71 = tpu.matmul %69, %70, %cst_29 {dimension_numbers = #tpu.dot_dimension_numbers<[1], [0], [0], [1], [0, 0, 1, 1], [], []>} : vector<8x16xf32>, vector<16x128xf32>, vector<8x128xf32> -> vector<8x128xf32>
    %c0_30 = arith.constant 0 : index
    %c896 = arith.constant 896 : index
    %72 = vector.load %arg3[%c0_30, %c896] : memref<1x1920xf32, #tpu.memory_space<vmem>>, vector<1x128xf32>
    %73 = vector.broadcast %72 : vector<1x128xf32> to vector<8x128xf32>
    %74 = arith.addf %71, %73 : vector<8x128xf32>
    %c128_31 = arith.constant 128 : index
    %c0_32 = arith.constant 0 : index
    %75 = vector.load %arg2[%c128_31, %c0_32] : memref<320x128xf32, #tpu.memory_space<vmem>>, vector<12x32xf32>
    %cst_33 = arith.constant dense<0.000000e+00> : vector<8x32xf32>
    %76 = tpu.matmul %0, %75, %cst_33 {dimension_numbers = #tpu.dot_dimension_numbers<[1], [0], [0], [1], [0, 0, 1, 1], [], []>} : vector<8x12xf32>, vector<12x32xf32>, vector<8x32xf32> -> vector<8x32xf32>
    %c144 = arith.constant 144 : index
    %c0_34 = arith.constant 0 : index
    %77 = vector.load %arg2[%c144, %c0_34] : memref<320x128xf32, #tpu.memory_space<vmem>>, vector<128x32xf32>
    %cst_35 = arith.constant dense<0.000000e+00> : vector<8x32xf32>
    %78 = tpu.matmul %74, %77, %cst_35 {dimension_numbers = #tpu.dot_dimension_numbers<[1], [0], [0], [1], [0, 0, 1, 1], [], []>} : vector<8x128xf32>, vector<128x32xf32>, vector<8x32xf32> -> vector<8x32xf32>
    %79 = arith.addf %76, %78 : vector<8x32xf32>
    %c0_36 = arith.constant 0 : index
    %c1024 = arith.constant 1024 : index
    %80 = vector.load %arg3[%c0_36, %c1024] : memref<1x1920xf32, #tpu.memory_space<vmem>>, vector<1x32xf32>
    %81 = vector.broadcast %80 : vector<1x32xf32> to vector<8x32xf32>
    %82 = arith.addf %79, %81 : vector<8x32xf32>
    %c0_37 = arith.constant 0 : index
    %c1152 = arith.constant 1152 : index
    %83 = vector.load %arg3[%c0_37, %c1152] : memref<1x1920xf32, #tpu.memory_space<vmem>>, vector<1x32xf32>
    %c0_38 = arith.constant 0 : index
    %c1280 = arith.constant 1280 : index
    %84 = vector.load %arg3[%c0_38, %c1280] : memref<1x1920xf32, #tpu.memory_space<vmem>>, vector<1x32xf32>
    %cst_39 = arith.constant dense<0.000000e+00> : vector<8xf32>
    %85 = vector.multi_reduction <add>, %82, %cst_39 [1] : vector<8x32xf32> to vector<8xf32>
    %86 = vector.shape_cast %85 : vector<8xf32> to vector<8x1xf32>
    %cst_40 = arith.constant 3.200000e+01 : f32
    %87 = vector.broadcast %cst_40 : f32 to vector<8x1xf32>
    %88 = arith.divf %86, %87 : vector<8x1xf32>
    %89 = vector.broadcast %88 : vector<8x1xf32> to vector<8x32xf32>
    %90 = arith.subf %82, %89 : vector<8x32xf32>
    %91 = arith.mulf %90, %90 : vector<8x32xf32>
    %cst_41 = arith.constant dense<0.000000e+00> : vector<8xf32>
    %92 = vector.multi_reduction <add>, %91, %cst_41 [1] : vector<8x32xf32> to vector<8xf32>
    %93 = vector.shape_cast %92 : vector<8xf32> to vector<8x1xf32>
    %cst_42 = arith.constant 3.200000e+01 : f32
    %94 = vector.broadcast %cst_42 : f32 to vector<8x1xf32>
    %95 = arith.divf %93, %94 : vector<8x1xf32>
    %96 = vector.broadcast %88 : vector<8x1xf32> to vector<8x32xf32>
    %97 = arith.subf %82, %96 : vector<8x32xf32>
    %cst_43 = arith.constant 9.99999974E-6 : f32
    %98 = vector.broadcast %cst_43 : f32 to vector<8x1xf32>
    %99 = arith.addf %95, %98 : vector<8x1xf32>
    %100 = math.rsqrt %99 : vector<8x1xf32>
    %101 = vector.broadcast %100 : vector<8x1xf32> to vector<8x32xf32>
    %102 = arith.mulf %97, %101 : vector<8x32xf32>
    %103 = vector.broadcast %83 : vector<1x32xf32> to vector<8x32xf32>
    %104 = arith.mulf %102, %103 : vector<8x32xf32>
    %105 = vector.broadcast %84 : vector<1x32xf32> to vector<8x32xf32>
    %106 = arith.addf %104, %105 : vector<8x32xf32>
    %cst_44 = arith.constant 0.000000e+00 : f32
    %107 = vector.broadcast %cst_44 : f32 to vector<8x32xf32>
    %108 = arith.maximumf %106, %107 : vector<8x32xf32>
    %c272 = arith.constant 272 : index
    %c0_45 = arith.constant 0 : index
    %109 = vector.load %arg2[%c272, %c0_45] : memref<320x128xf32, #tpu.memory_space<vmem>>, vector<32x16xf32>
    %cst_46 = arith.constant dense<0.000000e+00> : vector<8x16xf32>
    %110 = tpu.matmul %108, %109, %cst_46 {dimension_numbers = #tpu.dot_dimension_numbers<[1], [0], [0], [1], [0, 0, 1, 1], [], []>} : vector<8x32xf32>, vector<32x16xf32>, vector<8x16xf32> -> vector<8x16xf32>
    %c0_47 = arith.constant 0 : index
    %c1408 = arith.constant 1408 : index
    %111 = vector.load %arg3[%c0_47, %c1408] : memref<1x1920xf32, #tpu.memory_space<vmem>>, vector<1x16xf32>
    %112 = vector.broadcast %111 : vector<1x16xf32> to vector<8x16xf32>
    %113 = arith.addf %110, %112 : vector<8x16xf32>
    %c0_48 = arith.constant 0 : index
    %c1536 = arith.constant 1536 : index
    %114 = vector.load %arg3[%c0_48, %c1536] : memref<1x1920xf32, #tpu.memory_space<vmem>>, vector<1x16xf32>
    %c0_49 = arith.constant 0 : index
    %c1664 = arith.constant 1664 : index
    %115 = vector.load %arg3[%c0_49, %c1664] : memref<1x1920xf32, #tpu.memory_space<vmem>>, vector<1x16xf32>
    %cst_50 = arith.constant dense<0.000000e+00> : vector<8xf32>
    %116 = vector.multi_reduction <add>, %113, %cst_50 [1] : vector<8x16xf32> to vector<8xf32>
    %117 = vector.shape_cast %116 : vector<8xf32> to vector<8x1xf32>
    %cst_51 = arith.constant 1.600000e+01 : f32
    %118 = vector.broadcast %cst_51 : f32 to vector<8x1xf32>
    %119 = arith.divf %117, %118 : vector<8x1xf32>
    %120 = vector.broadcast %119 : vector<8x1xf32> to vector<8x16xf32>
    %121 = arith.subf %113, %120 : vector<8x16xf32>
    %122 = arith.mulf %121, %121 : vector<8x16xf32>
    %cst_52 = arith.constant dense<0.000000e+00> : vector<8xf32>
    %123 = vector.multi_reduction <add>, %122, %cst_52 [1] : vector<8x16xf32> to vector<8xf32>
    %124 = vector.shape_cast %123 : vector<8xf32> to vector<8x1xf32>
    %cst_53 = arith.constant 1.600000e+01 : f32
    %125 = vector.broadcast %cst_53 : f32 to vector<8x1xf32>
    %126 = arith.divf %124, %125 : vector<8x1xf32>
    %127 = vector.broadcast %119 : vector<8x1xf32> to vector<8x16xf32>
    %128 = arith.subf %113, %127 : vector<8x16xf32>
    %cst_54 = arith.constant 9.99999974E-6 : f32
    %129 = vector.broadcast %cst_54 : f32 to vector<8x1xf32>
    %130 = arith.addf %126, %129 : vector<8x1xf32>
    %131 = math.rsqrt %130 : vector<8x1xf32>
    %132 = vector.broadcast %131 : vector<8x1xf32> to vector<8x16xf32>
    %133 = arith.mulf %128, %132 : vector<8x16xf32>
    %134 = vector.broadcast %114 : vector<1x16xf32> to vector<8x16xf32>
    %135 = arith.mulf %133, %134 : vector<8x16xf32>
    %136 = vector.broadcast %115 : vector<1x16xf32> to vector<8x16xf32>
    %137 = arith.addf %135, %136 : vector<8x16xf32>
    %cst_55 = arith.constant 0.000000e+00 : f32
    %138 = vector.broadcast %cst_55 : f32 to vector<8x16xf32>
    %139 = arith.maximumf %137, %138 : vector<8x16xf32>
    %c304 = arith.constant 304 : index
    %c0_56 = arith.constant 0 : index
    %140 = vector.load %arg2[%c304, %c0_56] : memref<320x128xf32, #tpu.memory_space<vmem>>, vector<16x128xf32>
    %cst_57 = arith.constant dense<0.000000e+00> : vector<8x128xf32>
    %141 = tpu.matmul %139, %140, %cst_57 {dimension_numbers = #tpu.dot_dimension_numbers<[1], [0], [0], [1], [0, 0, 1, 1], [], []>} : vector<8x16xf32>, vector<16x128xf32>, vector<8x128xf32> -> vector<8x128xf32>
    %c0_58 = arith.constant 0 : index
    %c1792 = arith.constant 1792 : index
    %142 = vector.load %arg3[%c0_58, %c1792] : memref<1x1920xf32, #tpu.memory_space<vmem>>, vector<1x128xf32>
    %143 = vector.broadcast %142 : vector<1x128xf32> to vector<8x128xf32>
    %144 = arith.addf %141, %143 : vector<8x128xf32>
    %cst_59 = arith.constant 1.000000e-01 : f32
    %145 = vector.broadcast %cst_59 : f32 to vector<8x128xf32>
    %146 = arith.mulf %145, %144 : vector<8x128xf32>
    %147 = arith.addf %74, %146 : vector<8x128xf32>
    %cst_60 = arith.constant -1.000000e+01 : f32
    %cst_61 = arith.constant 1.000000e+01 : f32
    %148 = vector.broadcast %cst_60 : f32 to vector<8x128xf32>
    %149 = arith.maximumf %148, %147 : vector<8x128xf32>
    %150 = vector.broadcast %cst_61 : f32 to vector<8x128xf32>
    %151 = arith.minimumf %150, %149 : vector<8x128xf32>
    %c0_62 = arith.constant 0 : index
    %c0_63 = arith.constant 0 : index
    %152 = vector.load %arg4[%c0_62, %c0_63] : memref<8x128xf32, #tpu.memory_space<vmem>>, vector<8x128xf32>
    tpu.vector_store %arg4[%c0_62, %c0_63], %151 {strides = array<i32>} : memref<8x128xf32, #tpu.memory_space<vmem>>, vector<8x128xf32>,
    return
  }
  func.func @transform_0(%arg0: i32) -> (i32, i32) {
    %c0_i32 = arith.constant 0 : i32
    %c0_i32_0 = arith.constant 0 : i32
    return %arg0, %c0_i32 : i32, i32
  }
  func.func @transform_1(%arg0: i32) -> (i32, i32) {
    %c0_i32 = arith.constant 0 : i32
    %c0_i32_0 = arith.constant 0 : i32
    %c0_i32_1 = arith.constant 0 : i32
    return %c0_i32, %c0_i32_0 : i32, i32
  }
  func.func @transform_2(%arg0: i32) -> (i32, i32) {
    %c0_i32 = arith.constant 0 : i32
    %c0_i32_0 = arith.constant 0 : i32
    %c0_i32_1 = arith.constant 0 : i32
    return %c0_i32, %c0_i32_0 : i32, i32
  }
  func.func @transform_3(%arg0: i32) -> (i32, i32) {
    %c0_i32 = arith.constant 0 : i32
    %c0_i32_0 = arith.constant 0 : i32
    return %arg0, %c0_i32 : i32, i32
  }
}

</mosaic_0001>

<llo_original>
// kernel: tpu_custom_call.1
$region0: #{tpu_custom_call.1}
  #allocation0 [shape = 'u32[]', space=smem, size = 0x4, offset = 0x4, fixed_abs, tag = 'smem constant byte address 0x4 - core index']
  #allocation1 [shape = 'u32[144,128]{1,0:T(1,128)}', space=vmem, size = 0x12000, scoped, tag = 'internal scratch']
  %s0 = inlined_call_operand.hbm [shape: f32[8,12], index: 0, kind: input, shape index: {}]
  %s1 = inlined_call_operand.hbm [shape: f32[320,128], index: 1, kind: input, shape index: {}]
  %s2 = inlined_call_operand.hbm [shape: f32[1,1920], index: 2, kind: input, shape index: {}]
  %s3 = inlined_call_operand.hbm [shape: f32[8,128], index: 3, kind: output, shape index: {}]
  %s4 = sld [smem:[#allocation0]]
  $region34: #{tpu_custom_call.1} parent=0
    _
  %s6 = ssub.s32 1, %s4
  %s7 = scalar_select 0, %s6, %s4
  $region1: #{tpu_custom_call.1} parent=0
    #allocation2 [shape = 'u8[4096]{0}', space=vmem, size = 0x1000, scoped, tag = 'input window, operand 0, single buffered']
    #allocation3 [shape = 's32[1]{0}', space=sflag, size = 0x4, scoped, tag = 'scoped memory for tpu_custom_call.1']
    #allocation4 [shape = 's32[1]{0}', space=sflag, size = 0x4, scoped, tag = 'scoped memory for tpu_custom_call.1']
    #allocation5 [shape = 'u8[163840]{0}', space=vmem, size = 0x28000, scoped, tag = 'input window, operand 1, single buffered']
    #allocation6 [shape = 's32[1]{0}', space=sflag, size = 0x4, scoped, tag = 'scoped memory for tpu_custom_call.1']
    #allocation7 [shape = 'u8[7680]{0}', space=vmem, size = 0x2000, scoped, tag = 'input window, operand 2, single buffered']
    #allocation8 [shape = 'u8[4096]{0}', space=vmem, size = 0x1000, scoped, tag = 'output window, operand 0, single buffered']
    %8 = vsyncpa [#allocation3], 0
    %9 = vsyncpa [#allocation6], 0
    %10 = vsyncpa [#allocation4], 0
    // Predicated region
    $region2: #{tpu_custom_call.1} parent=1 // pred_check
      _
    $region3: #{tpu_custom_call.1} parent=1 // pred_check_branch
      %12 = sbr.rel (0) target = $region5
    $region4: #{tpu_custom_call.1} parent=1 // pred_region
      %s14 = ssub.s32 128, 128
      %15 = vsyncadd [#allocation3], %s14
      %s17 = sshll.u32 [#allocation2], 4
      %s18 = int_to_ptr.vmem [resolvable:$true] %s17
      %20 = dma.hbm_to_vmem [thread:$0]  %s0, 128, %s18, [#allocation3]
    $region5: #{tpu_custom_call.1} parent=1 // pred_fallthru
      _
    // Predicated region
    $region6: #{tpu_custom_call.1} parent=1 // pred_check
      _
    $region7: #{tpu_custom_call.1} parent=1 // pred_check_branch
      %22 = sbr.rel (0) target = $region9
    $region8: #{tpu_custom_call.1} parent=1 // pred_region
      %s24 = ssub.s32 5120, 5120
      %25 = vsyncadd [#allocation6], %s24
      %s26 = sshll.u32 [#allocation5], 4
      %s27 = int_to_ptr.vmem [resolvable:$true] %s26
      %32 = dma.hbm_to_vmem [thread:$0]  %s1, 5120, %s27, [#allocation6], 128, 128, 8
    $region9: #{tpu_custom_call.1} parent=1 // pred_fallthru
      _
    // Predicated region
    $region10: #{tpu_custom_call.1} parent=1 // pred_check
      _
    $region11: #{tpu_custom_call.1} parent=1 // pred_check_branch
      %34 = sbr.rel (0) target = $region13
    $region12: #{tpu_custom_call.1} parent=1 // pred_region
      %s36 = ssub.s32 240, 240
      %37 = vsyncadd [#allocation6], %s36
      %s39 = sshll.u32 [#allocation7], 4
      %s40 = int_to_ptr.vmem [resolvable:$true] %s39
      %42 = dma.hbm_to_vmem [thread:$0]  %s2, 240, %s40, [#allocation6]
    $region13: #{tpu_custom_call.1} parent=1 // pred_fallthru
      _
    // Predicated region
    $region14: #{tpu_custom_call.1} parent=1 // pred_check
      _
    $region15: #{tpu_custom_call.1} parent=1 // pred_check_branch
      %44 = sbr.rel (0) target = $region17
    $region16: #{tpu_custom_call.1} parent=1 // pred_region
      %45 = dma.done [#allocation3], 128
    $region17: #{tpu_custom_call.1} parent=1 // pred_fallthru
      _
    // Predicated region
    $region18: #{tpu_custom_call.1} parent=1 // pred_check
      _
    $region19: #{tpu_custom_call.1} parent=1 // pred_check_branch
      %47 = sbr.rel (0) target = $region21
    $region20: #{tpu_custom_call.1} parent=1 // pred_region
      %48 = dma.done [#allocation6], 5120
    $region21: #{tpu_custom_call.1} parent=1 // pred_fallthru
      _
    // Predicated region
    $region22: #{tpu_custom_call.1} parent=1 // pred_check
      _
    $region23: #{tpu_custom_call.1} parent=1 // pred_check_branch
      %50 = sbr.rel (0) target = $region25
    $region24: #{tpu_custom_call.1} parent=1 // pred_region
      %51 = dma.done [#allocation6], 240
    $region25: #{tpu_custom_call.1} parent=1 // pred_fallthru
      _
    %v52 = vld [vmem:[#allocation2] sm:$0xff]
    %v53 = vld [vmem:[#allocation5] sm:$0xff]
    %v54 = vld [vmem:[#allocation5 + $0x8] sm:$0xf]
    %v55 = vld [vmem:[#allocation7] sm:$0x1]
    %v57 = vlaneseq
    %v58 = vshrl.u32 %v57, 7
    %v59 = vsub.s32 0, %v58
    %v60 = vrot.slane %v55, %v59
    %vm62 = vcmask 97280
    %v64 = vsel %vm62, %v52, 0
    %vm66 = vcmask 1043456
    %v68 = vsel %vm66, %v54, 0
    %70 = vmatprep.subr.mxu0 0.0
    %71 = vmatpush1.msra.mxu0 %v53
    %72 = vmatprep.subr.mxu0 0.0
    %73 = vmatpush1.msra.mxu0 %v68
    %74 = vmatprep.subr.mxu0 0.0
    %75 = vmatpush1.msra.mxu0 0.0
    %76 = vmatprep.subr.mxu0 0.0
    %77 = vmatpush1.msra.mxu0 0.0
    %78 = vmatprep.subr.mxu0 0.0
    %79 = vmatpush1.msra.mxu0 0.0
    %80 = vmatprep.subr.mxu0 0.0
    %81 = vmatpush1.msra.mxu0 0.0
    %82 = vmatprep.subr.mxu0 0.0
    %83 = vmatpush1.msra.mxu0 0.0
    %84 = vmatprep.subr.mxu0 0.0
    %85 = vmatpush1.msra.mxu0 0.0
    %86 = vmatprep.subr.mxu0 0.0
    %87 = vmatpush1.msra.mxu0 0.0
    %88 = vmatprep.subr.mxu0 0.0
    %89 = vmatpush1.msra.mxu0 0.0
    %90 = vmatprep.subr.mxu0 0.0
    %91 = vmatpush1.msra.mxu0 0.0
    %92 = vmatprep.subr.mxu0 0.0
    %93 = vmatpush1.msra.mxu0 0.0
    %94 = vmatprep.subr.mxu0 0.0
    %95 = vmatpush1.msra.mxu0 0.0
    %96 = vmatprep.subr.mxu0 0.0
    %97 = vmatpush1.msra.mxu0 0.0
    %98 = vmatprep.subr.mxu0 0.0
    %99 = vmatpush1.msra.mxu0 0.0
    %100 = vmatprep.subr.mxu0 0.0
    %101 = vmatpush1.msra.mxu0 0.0
    %102 = vmatprep.subr.mxu0 0.0
    %103 = vmatpush1.msra.mxu0 0.0
    %104 = vmatprep.subr.mxu0 0.0
    %105 = vmatpush1.msra.mxu0 0.0
    %106 = vmatprep.subr.mxu0 0.0
    %107 = vmatpush1.msra.mxu0 0.0
    %108 = vmatprep.subr.mxu0 0.0
    %109 = vmatpush1.msra.mxu0 0.0
    %110 = vmatprep.subr.mxu0 0.0
    %111 = vmatpush1.msra.mxu0 0.0
    %112 = vmatprep.subr.mxu0 0.0
    %113 = vmatpush1.msra.mxu0 0.0
    %114 = vmatprep.subr.mxu0 0.0
    %115 = vmatpush1.msra.mxu0 0.0
    %116 = vmatprep.subr.mxu0 0.0
    %117 = vmatpush1.msra.mxu0 0.0
    %118 = vmatprep.subr.mxu0 0.0
    %119 = vmatpush1.msra.mxu0 0.0
    %120 = vmatprep.subr.mxu0 0.0
    %121 = vmatpush1.msra.mxu0 0.0
    %122 = vmatprep.subr.mxu0 0.0
    %123 = vmatpush1.msra.mxu0 0.0
    %124 = vmatprep.subr.mxu0 0.0
    %125 = vmatpush1.msra.mxu0 0.0
    %126 = vmatprep.subr.mxu0 0.0
    %127 = vmatpush1.msra.mxu0 0.0
    %128 = vmatprep.subr.mxu0 0.0
    %129 = vmatpush1.msra.mxu0 0.0
    %130 = vmatprep.subr.mxu0 0.0
    %131 = vmatpush1.msra.mxu0 0.0
    %132 = vmatprep.subr.mxu0 0.0
    %133 = vmatpush1.msra.mxu0 0.0
    %134 = vmatprep.mubr.f32.mxu0 0.0
    %135 = vmatmul.mubr.f32.gmra.mrb[0].mxu0 %v64
    %v136 = vpop.f32.mrb[0].mxu0
    %v137 = vadd.f32 %v60, %v136
    %v138 = vpop.f32.mrb[0].mxu0
    %139 = vdwg.mxu0
    %v140 = vld [vmem:[#allocation7 + $0x1] sm:$0x1]
    %v141 = vld [vmem:[#allocation7 + $0x2] sm:$0x1]
    %vm142 = vcmask 523264
    %v143 = vsel %vm142, %v137, 0.0
    %144 = vadd.xlane.f32.xlu0 %v143
    %v145 = vpop.xlane.xlu0 %144
    %v146 = vrcp.pop 64.0
    %v147 = vmul.f32 %v145, %v146
    %v148 = vsub.f32 %v137, %v147
    %v149 = vmul.f32 %v148, %v148
    %v150 = vsel %vm142, %v149, 0.0
    %151 = vadd.xlane.f32.xlu0 %v150
    %v152 = vpop.xlane.xlu0 %151
    %v153 = vmul.f32 %v152, %v146
    %v154 = vadd.f32 %v153, 1e-05
    %v155 = vrsqrt.pop %v154
    %v156 = vmul.f32 %v148, %v155
    %v158 = vlaneseq
    %v159 = vshrl.u32 %v158, 7
    %v160 = vsub.s32 0, %v159
    %v161 = vrot.slane %v140, %v160
    %v163 = vmul.f32 %v156, %v161
    %v165 = vlaneseq
    %v166 = vshrl.u32 %v165, 7
    %v167 = vsub.s32 0, %v166
    %v168 = vrot.slane %v141, %v167
    %v170 = vadd.f32 %v163, %v168
    %v171 = vmax.f32 %v170, 0.0
    %v172 = vld [vmem:[#allocation5 + $0x10] sm:$0xff]
    %v173 = vld [vmem:[#allocation5 + $0x18] sm:$0xff]
    %v174 = vld [vmem:[#allocation5 + $0x20] sm:$0xff]
    %v175 = vld [vmem:[#allocation5 + $0x28] sm:$0xff]
    %v176 = vld [vmem:[#allocation5 + $0x30] sm:$0xff]
    %v177 = vld [vmem:[#allocation5 + $0x38] sm:$0xff]
    %v178 = vld [vmem:[#allocation5 + $0x40] sm:$0xff]
    %v179 = vld [vmem:[#allocation5 + $0x48] sm:$0xff]
    %v180 = vld [vmem:[#allocation7 + $0x3] sm:$0x1]
    %v182 = vlaneseq
    %v183 = vshrl.u32 %v182, 7
    %v184 = vsub.s32 0, %v183
    %v185 = vrot.slane %v180, %v184
    %v188 = vsel %vm142, %v171, 0
    %190 = vmatprep.subr.mxu0 0.0
    %191 = vmatpush1.msra.mxu0 %v172
    %192 = vmatprep.subr.mxu0 0.0
    %193 = vmatpush1.msra.mxu0 %v173
    %194 = vmatprep.subr.mxu0 0.0
    %195 = vmatpush1.msra.mxu0 %v174
    %196 = vmatprep.subr.mxu0 0.0
    %197 = vmatpush1.msra.mxu0 %v175
    %198 = vmatprep.subr.mxu0 0.0
    %199 = vmatpush1.msra.mxu0 %v176
    %200 = vmatprep.subr.mxu0 0.0
    %201 = vmatpush1.msra.mxu0 %v177
    %202 = vmatprep.subr.mxu0 0.0
    %203 = vmatpush1.msra.mxu0 %v178
    %204 = vmatprep.subr.mxu0 0.0
    %205 = vmatpush1.msra.mxu0 %v179
    %206 = vmatprep.subr.mxu0 0.0
    %207 = vmatpush1.msra.mxu0 0.0
    %208 = vmatprep.subr.mxu0 0.0
    %209 = vmatpush1.msra.mxu0 0.0
    %210 = vmatprep.subr.mxu0 0.0
    %211 = vmatpush1.msra.mxu0 0.0
    %212 = vmatprep.subr.mxu0 0.0
    %213 = vmatpush1.msra.mxu0 0.0
    %214 = vmatprep.subr.mxu0 0.0
    %215 = vmatpush1.msra.mxu0 0.0
    %216 = vmatprep.subr.mxu0 0.0
    %217 = vmatpush1.msra.mxu0 0.0
    %218 = vmatprep.subr.mxu0 0.0
    %219 = vmatpush1.msra.mxu0 0.0
    %220 = vmatprep.subr.mxu0 0.0
    %221 = vmatpush1.msra.mxu0 0.0
    %222 = vmatprep.subr.mxu0 0.0
    %223 = vmatpush1.msra.mxu0 0.0
    %224 = vmatprep.subr.mxu0 0.0
    %225 = vmatpush1.msra.mxu0 0.0
    %226 = vmatprep.subr.mxu0 0.0
    %227 = vmatpush1.msra.mxu0 0.0
    %228 = vmatprep.subr.mxu0 0.0
    %229 = vmatpush1.msra.mxu0 0.0
    %230 = vmatprep.subr.mxu0 0.0
    %231 = vmatpush1.msra.mxu0 0.0
    %232 = vmatprep.subr.mxu0 0.0
    %233 = vmatpush1.msra.mxu0 0.0
    %234 = vmatprep.subr.mxu0 0.0
    %235 = vmatpush1.msra.mxu0 0.0
    %236 = vmatprep.subr.mxu0 0.0
    %237 = vmatpush1.msra.mxu0 0.0
    %238 = vmatprep.subr.mxu0 0.0
    %239 = vmatpush1.msra.mxu0 0.0
    %240 = vmatprep.subr.mxu0 0.0
    %241 = vmatpush1.msra.mxu0 0.0
    %242 = vmatprep.subr.mxu0 0.0
    %243 = vmatpush1.msra.mxu0 0.0
    %244 = vmatprep.subr.mxu0 0.0
    %245 = vmatpush1.msra.mxu0 0.0
    %246 = vmatprep.subr.mxu0 0.0
    %247 = vmatpush1.msra.mxu0 0.0
    %248 = vmatprep.subr.mxu0 0.0
    %249 = vmatpush1.msra.mxu0 0.0
    %250 = vmatprep.subr.mxu0 0.0
    %251 = vmatpush1.msra.mxu0 0.0
    %252 = vmatprep.subr.mxu0 0.0
    %253 = vmatpush1.msra.mxu0 0.0
    %254 = vmatprep.mubr.f32.mxu0 0.0
    %255 = vmatmul.mubr.f32.gmra.mrb[0].mxu0 %v188
    %v256 = vpop.f32.mrb[0].mxu0
    %v257 = vadd.f32 %v185, %v256
    %v258 = vpop.f32.mrb[0].mxu0
    %259 = vdwg.mxu0
    %v260 = vld [vmem:[#allocation7 + $0x4] sm:$0x1]
    %v261 = vld [vmem:[#allocation7 + $0x5] sm:$0x1]
    %vm262 = vcmask 261120
    %v263 = vsel %vm262, %v257, 0.0
    %264 = vadd.xlane.f32.xlu0 %v263
    %v265 = vpop.xlane.xlu0 %264
    %v266 = vrcp.pop 32.0
    %v267 = vmul.f32 %v265, %v266
    %v268 = vsub.f32 %v257, %v267
    %v269 = vmul.f32 %v268, %v268
    %v270 = vsel %vm262, %v269, 0.0
    %271 = vadd.xlane.f32.xlu0 %v270
    %v272 = vpop.xlane.xlu0 %271
    %v273 = vmul.f32 %v272, %v266
    %v274 = vadd.f32 %v273, 1e-05
    %v275 = vrsqrt.pop %v274
    %v276 = vmul.f32 %v268, %v275
    %v278 = vlaneseq
    %v279 = vshrl.u32 %v278, 7
    %v280 = vsub.s32 0, %v279
    %v281 = vrot.slane %v260, %v280
    %v283 = vmul.f32 %v276, %v281
    %v285 = vlaneseq
    %v286 = vshrl.u32 %v285, 7
    %v287 = vsub.s32 0, %v286
    %v288 = vrot.slane %v261, %v287
    %v290 = vadd.f32 %v283, %v288
    %v291 = vmax.f32 %v290, 0.0
    %v292 = vld [vmem:[#allocation5 + $0x50] sm:$0xff]
    %v293 = vld [vmem:[#allocation5 + $0x58] sm:$0xff]
    %v294 = vld [vmem:[#allocation5 + $0x60] sm:$0xff]
    %v295 = vld [vmem:[#allocation5 + $0x68] sm:$0xff]
    %v296 = vld [vmem:[#allocation7 + $0x6] sm:$0x1]
    %v298 = vlaneseq
    %v299 = vshrl.u32 %v298, 7
    %v300 = vsub.s32 0, %v299
    %v301 = vrot.slane %v296, %v300
    %v304 = vsel %vm262, %v291, 0
    %306 = vmatprep.subr.mxu0 0.0
    %307 = vmatpush1.msra.mxu0 %v292
    %308 = vmatprep.subr.mxu0 0.0
    %309 = vmatpush1.msra.mxu0 %v293
    %310 = vmatprep.subr.mxu0 0.0
    %311 = vmatpush1.msra.mxu0 %v294
    %312 = vmatprep.subr.mxu0 0.0
    %313 = vmatpush1.msra.mxu0 %v295
    %314 = vmatprep.subr.mxu0 0.0
    %315 = vmatpush1.msra.mxu0 0.0
    %316 = vmatprep.subr.mxu0 0.0
    %317 = vmatpush1.msra.mxu0 0.0
    %318 = vmatprep.subr.mxu0 0.0
    %319 = vmatpush1.msra.mxu0 0.0
    %320 = vmatprep.subr.mxu0 0.0
    %321 = vmatpush1.msra.mxu0 0.0
    %322 = vmatprep.subr.mxu0 0.0
    %323 = vmatpush1.msra.mxu0 0.0
    %324 = vmatprep.subr.mxu0 0.0
    %325 = vmatpush1.msra.mxu0 0.0
    %326 = vmatprep.subr.mxu0 0.0
    %327 = vmatpush1.msra.mxu0 0.0
    %328 = vmatprep.subr.mxu0 0.0
    %329 = vmatpush1.msra.mxu0 0.0
    %330 = vmatprep.subr.mxu0 0.0
    %331 = vmatpush1.msra.mxu0 0.0
    %332 = vmatprep.subr.mxu0 0.0
    %333 = vmatpush1.msra.mxu0 0.0
    %334 = vmatprep.subr.mxu0 0.0
    %335 = vmatpush1.msra.mxu0 0.0
    %336 = vmatprep.subr.mxu0 0.0
    %337 = vmatpush1.msra.mxu0 0.0
    %338 = vmatprep.subr.mxu0 0.0
    %339 = vmatpush1.msra.mxu0 0.0
    %340 = vmatprep.subr.mxu0 0.0
    %341 = vmatpush1.msra.mxu0 0.0
    %342 = vmatprep.subr.mxu0 0.0
    %343 = vmatpush1.msra.mxu0 0.0
    %344 = vmatprep.subr.mxu0 0.0
    %345 = vmatpush1.msra.mxu0 0.0
    %346 = vmatprep.subr.mxu0 0.0
    %347 = vmatpush1.msra.mxu0 0.0
    %348 = vmatprep.subr.mxu0 0.0
    %349 = vmatpush1.msra.mxu0 0.0
    %350 = vmatprep.subr.mxu0 0.0
    %351 = vmatpush1.msra.mxu0 0.0
    %352 = vmatprep.subr.mxu0 0.0
    %353 = vmatpush1.msra.mxu0 0.0
    %354 = vmatprep.subr.mxu0 0.0
    %355 = vmatpush1.msra.mxu0 0.0
    %356 = vmatprep.subr.mxu0 0.0
    %357 = vmatpush1.msra.mxu0 0.0
    %358 = vmatprep.subr.mxu0 0.0
    %359 = vmatpush1.msra.mxu0 0.0
    %360 = vmatprep.subr.mxu0 0.0
    %361 = vmatpush1.msra.mxu0 0.0
    %362 = vmatprep.subr.mxu0 0.0
    %363 = vmatpush1.msra.mxu0 0.0
    %364 = vmatprep.subr.mxu0 0.0
    %365 = vmatpush1.msra.mxu0 0.0
    %366 = vmatprep.subr.mxu0 0.0
    %367 = vmatpush1.msra.mxu0 0.0
    %368 = vmatprep.subr.mxu0 0.0
    %369 = vmatpush1.msra.mxu0 0.0
    %370 = vmatprep.mubr.f32.mxu0 0.0
    %371 = vmatmul.mubr.f32.gmra.mrb[0].mxu0 %v304
    %v372 = vpop.f32.mrb[0].mxu0
    %v373 = vadd.f32 %v301, %v372
    %v374 = vpop.f32.mrb[0].mxu0
    %375 = vdwg.mxu0
    %v376 = vmax.f32 %v373, 0.0
    %v377 = vld [vmem:[#allocation5 + $0x70] sm:$0xff]
    %v378 = vld [vmem:[#allocation5 + $0x78] sm:$0xff]
    %v379 = vld [vmem:[#allocation7 + $0x7] sm:$0x1]
    %v381 = vlaneseq
    %v382 = vshrl.u32 %v381, 7
    %v383 = vsub.s32 0, %v382
    %v384 = vrot.slane %v379, %v383
    %vm386 = vcmask 130048
    %v388 = vsel %vm386, %v376, 0
    %390 = vmatprep.subr.mxu0 0.0
    %391 = vmatpush1.msra.mxu0 %v377
    %392 = vmatprep.subr.mxu0 0.0
    %393 = vmatpush1.msra.mxu0 %v378
    %394 = vmatprep.subr.mxu0 0.0
    %395 = vmatpush1.msra.mxu0 0.0
    %396 = vmatprep.subr.mxu0 0.0
    %397 = vmatpush1.msra.mxu0 0.0
    %398 = vmatprep.subr.mxu0 0.0
    %399 = vmatpush1.msra.mxu0 0.0
    %400 = vmatprep.subr.mxu0 0.0
    %401 = vmatpush1.msra.mxu0 0.0
    %402 = vmatprep.subr.mxu0 0.0
    %403 = vmatpush1.msra.mxu0 0.0
    %404 = vmatprep.subr.mxu0 0.0
    %405 = vmatpush1.msra.mxu0 0.0
    %406 = vmatprep.subr.mxu0 0.0
    %407 = vmatpush1.msra.mxu0 0.0
    %408 = vmatprep.subr.mxu0 0.0
    %409 = vmatpush1.msra.mxu0 0.0
    %410 = vmatprep.subr.mxu0 0.0
    %411 = vmatpush1.msra.mxu0 0.0
    %412 = vmatprep.subr.mxu0 0.0
    %413 = vmatpush1.msra.mxu0 0.0
    %414 = vmatprep.subr.mxu0 0.0
    %415 = vmatpush1.msra.mxu0 0.0
    %416 = vmatprep.subr.mxu0 0.0
    %417 = vmatpush1.msra.mxu0 0.0
    %418 = vmatprep.subr.mxu0 0.0
    %419 = vmatpush1.msra.mxu0 0.0
    %420 = vmatprep.subr.mxu0 0.0
    %421 = vmatpush1.msra.mxu0 0.0
    %422 = vmatprep.subr.mxu0 0.0
    %423 = vmatpush1.msra.mxu0 0.0
    %424 = vmatprep.subr.mxu0 0.0
    %425 = vmatpush1.msra.mxu0 0.0
    %426 = vmatprep.subr.mxu0 0.0
    %427 = vmatpush1.msra.mxu0 0.0
    %428 = vmatprep.subr.mxu0 0.0
    %429 = vmatpush1.msra.mxu0 0.0
    %430 = vmatprep.subr.mxu0 0.0
    %431 = vmatpush1.msra.mxu0 0.0
    %432 = vmatprep.subr.mxu0 0.0
    %433 = vmatpush1.msra.mxu0 0.0
    %434 = vmatprep.subr.mxu0 0.0
    %435 = vmatpush1.msra.mxu0 0.0
    %436 = vmatprep.subr.mxu0 0.0
    %437 = vmatpush1.msra.mxu0 0.0
    %438 = vmatprep.subr.mxu0 0.0
    %439 = vmatpush1.msra.mxu0 0.0
    %440 = vmatprep.subr.mxu0 0.0
    %441 = vmatpush1.msra.mxu0 0.0
    %442 = vmatprep.subr.mxu0 0.0
    %443 = vmatpush1.msra.mxu0 0.0
    %444 = vmatprep.subr.mxu0 0.0
    %445 = vmatpush1.msra.mxu0 0.0
    %446 = vmatprep.subr.mxu0 0.0
    %447 = vmatpush1.msra.mxu0 0.0
    %448 = vmatprep.subr.mxu0 0.0
    %449 = vmatpush1.msra.mxu0 0.0
    %450 = vmatprep.subr.mxu0 0.0
    %451 = vmatpush1.msra.mxu0 0.0
    %452 = vmatprep.subr.mxu0 0.0
    %453 = vmatpush1.msra.mxu0 0.0
    %454 = vmatprep.mubr.f32.mxu0 0.0
    %455 = vmatmul.mubr.f32.gmra.mrb[0].mxu0 %v388
    %v456 = vpop.f32.mrb[0].mxu0
    %v457 = vadd.f32 %v384, %v456
    %v458 = vpop.f32.mrb[0].mxu0
    %459 = vdwg.mxu0
    %v460 = vld [vmem:[#allocation5 + $0x80] sm:$0xff]
    %v461 = vld [vmem:[#allocation5 + $0x88] sm:$0xf]
    %v462 = vld [vmem:[#allocation5 + $0x90] sm:$0xff]
    %v463 = vld [vmem:[#allocation5 + $0x98] sm:$0xff]
    %v464 = vld [vmem:[#allocation5 + $0xa0] sm:$0xff]
    %v465 = vld [vmem:[#allocation5 + $0xa8] sm:$0xff]
    %v466 = vld [vmem:[#allocation5 + $0xb0] sm:$0xff]
    %v467 = vld [vmem:[#allocation5 + $0xb8] sm:$0xff]
    %v468 = vld [vmem:[#allocation5 + $0xc0] sm:$0xff]
    %v469 = vld [vmem:[#allocation5 + $0xc8] sm:$0xff]
    %v470 = vld [vmem:[#allocation5 + $0xd0] sm:$0xff]
    %v471 = vld [vmem:[#allocation5 + $0xd8] sm:$0xff]
    %v472 = vld [vmem:[#allocation5 + $0xe0] sm:$0xff]
    %v473 = vld [vmem:[#allocation5 + $0xe8] sm:$0xff]
    %v474 = vld [vmem:[#allocation5 + $0xf0] sm:$0xff]
    %v475 = vld [vmem:[#allocation5 + $0xf8] sm:$0xff]
    %v476 = vld [vmem:[#allocation5 + $0x100] sm:$0xff]
    %v477 = vld [vmem:[#allocation5 + $0x108] sm:$0xff]
    %478 = vmatprep.subr.mxu0 0.0
    %479 = vmatpush1.msra.mxu0 %v462
    %480 = vmatprep.subr.mxu0 0.0
    %481 = vmatpush1.msra.mxu0 %v463
    %482 = vmatprep.subr.mxu0 0.0
    %483 = vmatpush1.msra.mxu0 %v464
    %484 = vmatprep.subr.mxu0 0.0
    %485 = vmatpush1.msra.mxu0 %v465
    %486 = vmatprep.subr.mxu0 0.0
    %487 = vmatpush1.msra.mxu0 %v466
    %488 = vmatprep.subr.mxu0 0.0
    %489 = vmatpush1.msra.mxu0 %v467
    %490 = vmatprep.subr.mxu0 0.0
    %491 = vmatpush1.msra.mxu0 %v468
    %492 = vmatprep.subr.mxu0 0.0
    %493 = vmatpush1.msra.mxu0 %v469
    %494 = vmatprep.subr.mxu0 0.0
    %495 = vmatpush1.msra.mxu0 %v470
    %496 = vmatprep.subr.mxu0 0.0
    %497 = vmatpush1.msra.mxu0 %v471
    %498 = vmatprep.subr.mxu0 0.0
    %499 = vmatpush1.msra.mxu0 %v472
    %500 = vmatprep.subr.mxu0 0.0
    %501 = vmatpush1.msra.mxu0 %v473
    %502 = vmatprep.subr.mxu0 0.0
    %503 = vmatpush1.msra.mxu0 %v474
    %504 = vmatprep.subr.mxu0 0.0
    %505 = vmatpush1.msra.mxu0 %v475
    %506 = vmatprep.subr.mxu0 0.0
    %507 = vmatpush1.msra.mxu0 %v476
    %508 = vmatprep.subr.mxu0 0.0
    %509 = vmatpush1.msra.mxu0 %v477
    %510 = vmatprep.subr.mxu0 0.0
    %511 = vmatpush1.msra.mxu0 0.0
    %512 = vmatprep.subr.mxu0 0.0
    %513 = vmatpush1.msra.mxu0 0.0
    %514 = vmatprep.subr.mxu0 0.0
    %515 = vmatpush1.msra.mxu0 0.0
    %516 = vmatprep.subr.mxu0 0.0
    %517 = vmatpush1.msra.mxu0 0.0
    %518 = vmatprep.subr.mxu0 0.0
    %519 = vmatpush1.msra.mxu0 0.0
    %520 = vmatprep.subr.mxu0 0.0
    %521 = vmatpush1.msra.mxu0 0.0
    %522 = vmatprep.subr.mxu0 0.0
    %523 = vmatpush1.msra.mxu0 0.0
    %524 = vmatprep.subr.mxu0 0.0
    %525 = vmatpush1.msra.mxu0 0.0
    %526 = vmatprep.subr.mxu0 0.0
    %527 = vmatpush1.msra.mxu0 0.0
    %528 = vmatprep.subr.mxu0 0.0
    %529 = vmatpush1.msra.mxu0 0.0
    %530 = vmatprep.subr.mxu0 0.0
    %531 = vmatpush1.msra.mxu0 0.0
    %532 = vmatprep.subr.mxu0 0.0
    %533 = vmatpush1.msra.mxu0 0.0
    %534 = vmatprep.subr.mxu0 0.0
    %535 = vmatpush1.msra.mxu0 0.0
    %536 = vmatprep.subr.mxu0 0.0
    %537 = vmatpush1.msra.mxu0 0.0
    %538 = vmatprep.subr.mxu0 0.0
    %539 = vmatpush1.msra.mxu0 0.0
    %540 = vmatprep.subr.mxu0 0.0
    %541 = vmatpush1.msra.mxu0 0.0
    %542 = vmatprep.mubr.f32.mxu0 0.0
    %543 = vmatmul.mubr.f32.gmra.mrb[0].mxu0 %v457
    %v544 = vpop.f32.mrb[0].mxu0
    %v545 = vadd.f32 0.0, %v544
    %v546 = vpop.f32.mrb[0].mxu0
    %547 = vdwg.mxu0
    %v549 = vsel %vm66, %v461, 0
    %551 = vmatprep.subr.mxu0 0.0
    %552 = vmatpush1.msra.mxu0 %v460
    %553 = vmatprep.subr.mxu0 0.0
    %554 = vmatpush1.msra.mxu0 %v549
    %555 = vmatprep.subr.mxu0 0.0
    %556 = vmatpush1.msra.mxu0 0.0
    %557 = vmatprep.subr.mxu0 0.0
    %558 = vmatpush1.msra.mxu0 0.0
    %559 = vmatprep.subr.mxu0 0.0
    %560 = vmatpush1.msra.mxu0 0.0
    %561 = vmatprep.subr.mxu0 0.0
    %562 = vmatpush1.msra.mxu0 0.0
    %563 = vmatprep.subr.mxu0 0.0
    %564 = vmatpush1.msra.mxu0 0.0
    %565 = vmatprep.subr.mxu0 0.0
    %566 = vmatpush1.msra.mxu0 0.0
    %567 = vmatprep.subr.mxu0 0.0
    %568 = vmatpush1.msra.mxu0 0.0
    %569 = vmatprep.subr.mxu0 0.0
    %570 = vmatpush1.msra.mxu0 0.0
    %571 = vmatprep.subr.mxu0 0.0
    %572 = vmatpush1.msra.mxu0 0.0
    %573 = vmatprep.subr.mxu0 0.0
    %574 = vmatpush1.msra.mxu0 0.0
    %575 = vmatprep.subr.mxu0 0.0
    %576 = vmatpush1.msra.mxu0 0.0
    %577 = vmatprep.subr.mxu0 0.0
    %578 = vmatpush1.msra.mxu0 0.0
    %579 = vmatprep.subr.mxu0 0.0
    %580 = vmatpush1.msra.mxu0 0.0
    %581 = vmatprep.subr.mxu0 0.0
    %582 = vmatpush1.msra.mxu0 0.0
    %583 = vmatprep.subr.mxu0 0.0
    %584 = vmatpush1.msra.mxu0 0.0
    %585 = vmatprep.subr.mxu0 0.0
    %586 = vmatpush1.msra.mxu0 0.0
    %587 = vmatprep.subr.mxu0 0.0
    %588 = vmatpush1.msra.mxu0 0.0
    %589 = vmatprep.subr.mxu0 0.0
    %590 = vmatpush1.msra.mxu0 0.0
    %591 = vmatprep.subr.mxu0 0.0
    %592 = vmatpush1.msra.mxu0 0.0
    %593 = vmatprep.subr.mxu0 0.0
    %594 = vmatpush1.msra.mxu0 0.0
    %595 = vmatprep.subr.mxu0 0.0
    %596 = vmatpush1.msra.mxu0 0.0
    %597 = vmatprep.subr.mxu0 0.0
    %598 = vmatpush1.msra.mxu0 0.0
    %599 = vmatprep.subr.mxu0 0.0
    %600 = vmatpush1.msra.mxu0 0.0
    %601 = vmatprep.subr.mxu0 0.0
    %602 = vmatpush1.msra.mxu0 0.0
    %603 = vmatprep.subr.mxu0 0.0
    %604 = vmatpush1.msra.mxu0 0.0
    %605 = vmatprep.subr.mxu0 0.0
    %606 = vmatpush1.msra.mxu0 0.0
    %607 = vmatprep.subr.mxu0 0.0
    %608 = vmatpush1.msra.mxu0 0.0
    %609 = vmatprep.subr.mxu0 0.0
    %610 = vmatpush1.msra.mxu0 0.0
    %611 = vmatprep.subr.mxu0 0.0
    %612 = vmatpush1.msra.mxu0 0.0
    %613 = vmatprep.subr.mxu0 0.0
    %614 = vmatpush1.msra.mxu0 0.0
    %615 = vmatprep.mubr.f32.mxu0 0.0
    %616 = vmatmul.mubr.f32.gmra.mrb[0].mxu0 %v64
    %v617 = vpop.f32.mrb[0].mxu0
    %v618 = vadd.f32 %v545, %v617
    %v619 = vpop.f32.mrb[0].mxu0
    %620 = vdwg.mxu0
    %v621 = vld [vmem:[#allocation7 + $0x8] sm:$0x1]
    %v623 = vlaneseq
    %v624 = vshrl.u32 %v623, 7
    %v625 = vsub.s32 0, %v624
    %v626 = vrot.slane %v621, %v625
    %v628 = vadd.f32 %v618, %v626
    %v629 = vld [vmem:[#allocation7 + $0x9] sm:$0x1]
    %v630 = vld [vmem:[#allocation7 + $0xa] sm:$0x1]
    %v631 = vsel %vm262, %v628, 0.0
    %632 = vadd.xlane.f32.xlu0 %v631
    %v633 = vpop.xlane.xlu0 %632
    %v634 = vmul.f32 %v633, %v266
    %v635 = vsub.f32 %v628, %v634
    %v636 = vmul.f32 %v635, %v635
    %v637 = vsel %vm262, %v636, 0.0
    %638 = vadd.xlane.f32.xlu0 %v637
    %v639 = vpop.xlane.xlu0 %638
    %v640 = vmul.f32 %v639, %v266
    %v641 = vadd.f32 %v640, 1e-05
    %v642 = vrsqrt.pop %v641
    %v643 = vmul.f32 %v635, %v642
    %v645 = vlaneseq
    %v646 = vshrl.u32 %v645, 7
    %v647 = vsub.s32 0, %v646
    %v648 = vrot.slane %v629, %v647
    %v650 = vmul.f32 %v643, %v648
    %v652 = vlaneseq
    %v653 = vshrl.u32 %v652, 7
    %v654 = vsub.s32 0, %v653
    %v655 = vrot.slane %v630, %v654
    %v657 = vadd.f32 %v650, %v655
    %v658 = vmax.f32 %v657, 0.0
    %v659 = vld [vmem:[#allocation5 + $0x110] sm:$0xff]
    %v660 = vld [vmem:[#allocation5 + $0x118] sm:$0xff]
    %v661 = vld [vmem:[#allocation5 + $0x120] sm:$0xff]
    %v662 = vld [vmem:[#allocation5 + $0x128] sm:$0xff]
    %v663 = vld [vmem:[#allocation7 + $0xb] sm:$0x1]
    %v665 = vlaneseq
    %v666 = vshrl.u32 %v665, 7
    %v667 = vsub.s32 0, %v666
    %v668 = vrot.slane %v663, %v667
    %v671 = vsel %vm262, %v658, 0
    %673 = vmatprep.subr.mxu0 0.0
    %674 = vmatpush1.msra.mxu0 %v659
    %675 = vmatprep.subr.mxu0 0.0
    %676 = vmatpush1.msra.mxu0 %v660
    %677 = vmatprep.subr.mxu0 0.0
    %678 = vmatpush1.msra.mxu0 %v661
    %679 = vmatprep.subr.mxu0 0.0
    %680 = vmatpush1.msra.mxu0 %v662
    %681 = vmatprep.subr.mxu0 0.0
    %682 = vmatpush1.msra.mxu0 0.0
    %683 = vmatprep.subr.mxu0 0.0
    %684 = vmatpush1.msra.mxu0 0.0
    %685 = vmatprep.subr.mxu0 0.0
    %686 = vmatpush1.msra.mxu0 0.0
    %687 = vmatprep.subr.mxu0 0.0
    %688 = vmatpush1.msra.mxu0 0.0
    %689 = vmatprep.subr.mxu0 0.0
    %690 = vmatpush1.msra.mxu0 0.0
    %691 = vmatprep.subr.mxu0 0.0
    %692 = vmatpush1.msra.mxu0 0.0
    %693 = vmatprep.subr.mxu0 0.0
    %694 = vmatpush1.msra.mxu0 0.0
    %695 = vmatprep.subr.mxu0 0.0
    %696 = vmatpush1.msra.mxu0 0.0
    %697 = vmatprep.subr.mxu0 0.0
    %698 = vmatpush1.msra.mxu0 0.0
    %699 = vmatprep.subr.mxu0 0.0
    %700 = vmatpush1.msra.mxu0 0.0
    %701 = vmatprep.subr.mxu0 0.0
    %702 = vmatpush1.msra.mxu0 0.0
    %703 = vmatprep.subr.mxu0 0.0
    %704 = vmatpush1.msra.mxu0 0.0
    %705 = vmatprep.subr.mxu0 0.0
    %706 = vmatpush1.msra.mxu0 0.0
    %707 = vmatprep.subr.mxu0 0.0
    %708 = vmatpush1.msra.mxu0 0.0
    %709 = vmatprep.subr.mxu0 0.0
    %710 = vmatpush1.msra.mxu0 0.0
    %711 = vmatprep.subr.mxu0 0.0
    %712 = vmatpush1.msra.mxu0 0.0
    %713 = vmatprep.subr.mxu0 0.0
    %714 = vmatpush1.msra.mxu0 0.0
    %715 = vmatprep.subr.mxu0 0.0
    %716 = vmatpush1.msra.mxu0 0.0
    %717 = vmatprep.subr.mxu0 0.0
    %718 = vmatpush1.msra.mxu0 0.0
    %719 = vmatprep.subr.mxu0 0.0
    %720 = vmatpush1.msra.mxu0 0.0
    %721 = vmatprep.subr.mxu0 0.0
    %722 = vmatpush1.msra.mxu0 0.0
    %723 = vmatprep.subr.mxu0 0.0
    %724 = vmatpush1.msra.mxu0 0.0
    %725 = vmatprep.subr.mxu0 0.0
    %726 = vmatpush1.msra.mxu0 0.0
    %727 = vmatprep.subr.mxu0 0.0
    %728 = vmatpush1.msra.mxu0 0.0
    %729 = vmatprep.subr.mxu0 0.0
    %730 = vmatpush1.msra.mxu0 0.0
    %731 = vmatprep.subr.mxu0 0.0
    %732 = vmatpush1.msra.mxu0 0.0
    %733 = vmatprep.subr.mxu0 0.0
    %734 = vmatpush1.msra.mxu0 0.0
    %735 = vmatprep.subr.mxu0 0.0
    %736 = vmatpush1.msra.mxu0 0.0
    %737 = vmatprep.mubr.f32.mxu0 0.0
    %738 = vmatmul.mubr.f32.gmra.mrb[0].mxu0 %v671
    %v739 = vpop.f32.mrb[0].mxu0
    %v740 = vadd.f32 %v668, %v739
    %v741 = vpop.f32.mrb[0].mxu0
    %742 = vdwg.mxu0
    %v743 = vld [vmem:[#allocation7 + $0xc] sm:$0x1]
    %v744 = vld [vmem:[#allocation7 + $0xd] sm:$0x1]
    %v745 = vsel %vm386, %v740, 0.0
    %746 = vadd.xlane.f32.xlu0 %v745
    %v747 = vpop.xlane.xlu0 %746
    %v748 = vrcp.pop 16.0
    %v749 = vmul.f32 %v747, %v748
    %v750 = vsub.f32 %v740, %v749
    %v751 = vmul.f32 %v750, %v750
    %v752 = vsel %vm386, %v751, 0.0
    %753 = vadd.xlane.f32.xlu0 %v752
    %v754 = vpop.xlane.xlu0 %753
    %v755 = vmul.f32 %v754, %v748
    %v756 = vadd.f32 %v755, 1e-05
    %v757 = vrsqrt.pop %v756
    %v758 = vmul.f32 %v750, %v757
    %v760 = vlaneseq
    %v761 = vshrl.u32 %v760, 7
    %v762 = vsub.s32 0, %v761
    %v763 = vrot.slane %v743, %v762
    %v765 = vmul.f32 %v758, %v763
    %v767 = vlaneseq
    %v768 = vshrl.u32 %v767, 7
    %v769 = vsub.s32 0, %v768
    %v770 = vrot.slane %v744, %v769
    %v772 = vadd.f32 %v765, %v770
    %v773 = vmax.f32 %v772, 0.0
    %v774 = vld [vmem:[#allocation5 + $0x130] sm:$0xff]
    %v775 = vld [vmem:[#allocation5 + $0x138] sm:$0xff]
    %v776 = vld [vmem:[#allocation7 + $0xe] sm:$0x1]
    %v778 = vlaneseq
    %v779 = vshrl.u32 %v778, 7
    %v780 = vsub.s32 0, %v779
    %v781 = vrot.slane %v776, %v780
    %v784 = vsel %vm386, %v773, 0
    %786 = vmatprep.subr.mxu0 0.0
    %787 = vmatpush1.msra.mxu0 %v774
    %788 = vmatprep.subr.mxu0 0.0
    %789 = vmatpush1.msra.mxu0 %v775
    %790 = vmatprep.subr.mxu0 0.0
    %791 = vmatpush1.msra.mxu0 0.0
    %792 = vmatprep.subr.mxu0 0.0
    %793 = vmatpush1.msra.mxu0 0.0
    %794 = vmatprep.subr.mxu0 0.0
    %795 = vmatpush1.msra.mxu0 0.0
    %796 = vmatprep.subr.mxu0 0.0
    %797 = vmatpush1.msra.mxu0 0.0
    %798 = vmatprep.subr.mxu0 0.0
    %799 = vmatpush1.msra.mxu0 0.0
    %800 = vmatprep.subr.mxu0 0.0
    %801 = vmatpush1.msra.mxu0 0.0
    %802 = vmatprep.subr.mxu0 0.0
    %803 = vmatpush1.msra.mxu0 0.0
    %804 = vmatprep.subr.mxu0 0.0
    %805 = vmatpush1.msra.mxu0 0.0
    %806 = vmatprep.subr.mxu0 0.0
    %807 = vmatpush1.msra.mxu0 0.0
    %808 = vmatprep.subr.mxu0 0.0
    %809 = vmatpush1.msra.mxu0 0.0
    %810 = vmatprep.subr.mxu0 0.0
    %811 = vmatpush1.msra.mxu0 0.0
    %812 = vmatprep.subr.mxu0 0.0
    %813 = vmatpush1.msra.mxu0 0.0
    %814 = vmatprep.subr.mxu0 0.0
    %815 = vmatpush1.msra.mxu0 0.0
    %816 = vmatprep.subr.mxu0 0.0
    %817 = vmatpush1.msra.mxu0 0.0
    %818 = vmatprep.subr.mxu0 0.0
    %819 = vmatpush1.msra.mxu0 0.0
    %820 = vmatprep.subr.mxu0 0.0
    %821 = vmatpush1.msra.mxu0 0.0
    %822 = vmatprep.subr.mxu0 0.0
    %823 = vmatpush1.msra.mxu0 0.0
    %824 = vmatprep.subr.mxu0 0.0
    %825 = vmatpush1.msra.mxu0 0.0
    %826 = vmatprep.subr.mxu0 0.0
    %827 = vmatpush1.msra.mxu0 0.0
    %828 = vmatprep.subr.mxu0 0.0
    %829 = vmatpush1.msra.mxu0 0.0
    %830 = vmatprep.subr.mxu0 0.0
    %831 = vmatpush1.msra.mxu0 0.0
    %832 = vmatprep.subr.mxu0 0.0
    %833 = vmatpush1.msra.mxu0 0.0
    %834 = vmatprep.subr.mxu0 0.0
    %835 = vmatpush1.msra.mxu0 0.0
    %836 = vmatprep.subr.mxu0 0.0
    %837 = vmatpush1.msra.mxu0 0.0
    %838 = vmatprep.subr.mxu0 0.0
    %839 = vmatpush1.msra.mxu0 0.0
    %840 = vmatprep.subr.mxu0 0.0
    %841 = vmatpush1.msra.mxu0 0.0
    %842 = vmatprep.subr.mxu0 0.0
    %843 = vmatpush1.msra.mxu0 0.0
    %844 = vmatprep.subr.mxu0 0.0
    %845 = vmatpush1.msra.mxu0 0.0
    %846 = vmatprep.subr.mxu0 0.0
    %847 = vmatpush1.msra.mxu0 0.0
    %848 = vmatprep.subr.mxu0 0.0
    %849 = vmatpush1.msra.mxu0 0.0
    %850 = vmatprep.mubr.f32.mxu0 0.0
    %851 = vmatmul.mubr.f32.gmra.mrb[0].mxu0 %v784
    %v852 = vpop.f32.mrb[0].mxu0
    %v853 = vadd.f32 %v781, %v852
    %v854 = vpop.f32.mrb[0].mxu0
    %855 = vdwg.mxu0
    %v856 = vmul.f32 %v853, 0.1
    %v857 = vadd.f32 %v457, %v856
    %v858 = vmax.f32 %v857, -10.0
    %v859 = vmin.f32 %v858, 10.0
    %860 = vst [vmem:[#allocation8] sm:$0xff] %v859
    // Predicated region
    $region26: #{tpu_custom_call.1} parent=1 // pred_check
      _
    $region27: #{tpu_custom_call.1} parent=1 // pred_check_branch
      %862 = sbr.rel (0) target = $region29
    $region28: #{tpu_custom_call.1} parent=1 // pred_region
      %s864 = ssub.s32 128, 128
      %865 = vsyncadd [#allocation4], %s864
      %s867 = sshll.u32 [#allocation8], 4
      %s868 = int_to_ptr.vmem [resolvable:$true] %s867
      %870 = dma.vmem_to_hbm [thread:$0]  %s868, 128, %s3, [#allocation4]
    $region29: #{tpu_custom_call.1} parent=1 // pred_fallthru
      _
    // Predicated region
    $region30: #{tpu_custom_call.1} parent=1 // pred_check
      _
    $region31: #{tpu_custom_call.1} parent=1 // pred_check_branch
      %872 = sbr.rel (0) target = $region33
    $region32: #{tpu_custom_call.1} parent=1 // pred_region
      %873 = dma.done [#allocation4], 128
    $region33: #{tpu_custom_call.1} parent=1 // pred_fallthru
      _
    %874 = vsyncpa [#allocation3], 1
    %875 = vsyncpa [#allocation6], 1
    %876 = vsyncpa [#allocation4], 1

</llo_original>
